<compile_context>
chip_gen: v7x
topology: tpu7x:2x2x1
jax: 0.10.0
libtpu: 0.0.40
codegen_flags: <defaults>
</compile_context>

<pallas_src>
import functools

import jax
import jax.numpy as jnp
import numpy as np
from jax import lax
from jax.experimental import pallas as pl
from jax.experimental.pallas import tpu as pltpu


def _lane_cumsum(x):
    """Inclusive prefix sum along the last (lane) axis.

    Hillis-Steele scan: log2(N) steps of (XLU roll + masked add).  Avoids any
    (N, N) triangular matrices and works for arbitrary N.
    """
    n = x.shape[-1]
    lane = lax.broadcasted_iota(jnp.int32, x.shape, 1)
    d = 1
    while d < n:
        rolled = pltpu.roll(x, d, axis=1)            # rolled[j] = x[j - d]
        x = x + jnp.where(lane >= d, rolled, 0)      # drop wrapped-around lanes
        d *= 2
    return x


def _local_idx_kernel(prefix_length,
                      sid_ref, ts_ref,
                      local_ref, sizes_ref, rsidx_ref, rts_ref):
    """local indices, shard sizes and the mask-compacted outputs."""
    N = sid_ref.shape[1]
    BS = sizes_ref.shape[0]

    sid = sid_ref[...]        # (1, N) int32
    ts = ts_ref[...]          # (1, N) float32

    # ---- local_idx: per-sample one-hot + lane prefix sum -----------------
    b_iota = lax.broadcasted_iota(jnp.int32, (BS, N), 0)      # sample id rows
    onehot = (sid == b_iota).astype(jnp.int32)                # (BS, N)
    prefix = _lane_cumsum(onehot)                             # (BS, N)
    # local[j] = prefix[sid[j], j] - 1  (one-hot has exactly one 1 per column)
    local = jnp.sum(onehot * prefix, axis=0, keepdims=True) - 1   # (1, N)
    local_ref[...] = local

    # shard_sizes[b] = #{j : sid[j] == b}
    sizes_ref[...] = jnp.sum(onehot, axis=1, keepdims=True)       # (BS, 1)

    # ---- selection masks and compaction positions ------------------------
    mask0 = local == prefix_length                                # (1, N)
    mask01 = mask0 | (local == prefix_length + 1)                 # (1, N)
    pos0 = _lane_cumsum(mask0.astype(jnp.int32)) - 1              # (1, N)
    pos01 = _lane_cumsum(mask01.astype(jnp.int32)) - 1            # (1, N)

    # ---- result_sample_idx[d] = sid[j] with mask0[j] and pos0[j] == d -----
    sel0 = mask0 & (pos0 == b_iota)                               # (BS, N)
    rsidx_ref[...] = jnp.sum(jnp.where(sel0, sid, 0),
                             axis=1, keepdims=True)               # (BS, 1)

    # ---- result_timestamps flat[d] = ts[j] with mask01[j], pos01[j] == d --
    d2_iota = lax.broadcasted_iota(jnp.int32, (2 * BS, N), 0)
    sel01 = mask01 & (pos01 == d2_iota)                           # (2BS, N)
    rts_ref[...] = jnp.sum(jnp.where(sel01, ts, 0.0),
                           axis=1, keepdims=True)                 # (2BS, 1)


@functools.lru_cache(maxsize=None)
def _build_local_idx_call(N, BS, prefix_length):
    """Builds (and caches) the compiled pallas_call for a given (N, BS, p)."""
    kernel = functools.partial(_local_idx_kernel, int(prefix_length))
    out_shapes = (
        jax.ShapeDtypeStruct((1, N), jnp.int32),         # local_idx (row)
        jax.ShapeDtypeStruct((BS, 1), jnp.int32),        # shard_sizes
        jax.ShapeDtypeStruct((BS, 1), jnp.int32),        # result_sample_idx
        jax.ShapeDtypeStruct((2 * BS, 1), jnp.float32),  # result_timestamps
    )
    call = pl.pallas_call(
        kernel,
        out_shape=out_shapes,
        grid=(1,),
        in_specs=[
            pl.BlockSpec((1, N), lambda i: (0, 0)),   # sample_idx, lane-dense
            pl.BlockSpec((1, N), lambda i: (0, 0)),   # timestamps, lane-dense
        ],
        out_specs=(
            pl.BlockSpec((1, N), lambda i: (0, 0)),
            pl.BlockSpec((BS, 1), lambda i: (0, 0)),
            pl.BlockSpec((BS, 1), lambda i: (0, 0)),
            pl.BlockSpec((2 * BS, 1), lambda i: (0, 0)),
        ),
        compiler_params=pltpu.CompilerParams(
            dimension_semantics=("arbitrary",)),
    )
    return jax.jit(call)


def model_forward(events, timestamps, sample_idx, imsize,
                  prefix_length=0, suffix_length=0,
                  raw=True, intermediate=False, validate=True):
    del events, raw  # `events` is unused by the reference forward pass

    # sample_idx determines *output shapes*, so it must be host-visible here
    # (the PyTorch reference does the same via `sample_idx[-1] + 1`).
    sample_idx_np = np.asarray(sample_idx)
    N = int(sample_idx_np.shape[0])
    batch_size = int(sample_idx_np[-1]) + 1        # torch: sample_idx[-1] + 1
    num_shards = int(sample_idx_np.max()) + 1      # torch: shard_idx.max() + 1
    BS = num_shards

    sid_row = jnp.asarray(sample_idx_np, jnp.int32).reshape(1, N)
    ts_row = jnp.asarray(timestamps, jnp.float32).reshape(1, N)

    call = _build_local_idx_call(N, BS, int(prefix_length))
    local_row, sizes_col, rsidx_col, rts_col = call(sid_row, ts_row)

    if validate:
        # Matches the reference assert; forces one small host sync.  Disable
        # with validate=False on the hot path.
        num_timestamps = np.asarray(sizes_col)[:, 0]
        assert (num_timestamps == 2 + prefix_length + suffix_length).all(), \
            "each sample must contain exactly 2 + prefix + suffix timestamps"

    local_idx = local_row.reshape(-1)
    result_sample_idx = rsidx_col.reshape(-1)
    result_timestamps = rts_col.reshape(-1, 2)

    # Zero pyramid outputs (pure glue; matches torch.zeros([B, 2, h, w])).
    outsize = [tuple(s // 2 ** i for s in imsize) for i in range(4)][::-1]
    result = tuple(jnp.zeros((batch_size, 2, h, w), jnp.float32)
                   for h, w in outsize)
    add_info = (tuple(),) if intermediate else tuple()
    return (result, result_timestamps, result_sample_idx) + add_info, local_idx


def _reference(sample_idx, timestamps, prefix_length):
    """Pure-numpy reference reproducing the PyTorch semantics."""
    sample_idx = np.asarray(sample_idx)
    N = sample_idx.shape[0]
    bs = int(sample_idx.max()) + 1
    local = np.zeros(N, np.int32)
    counts = np.zeros(bs, np.int32)
    for j, s in enumerate(sample_idx):
        local[j] = counts[s]
        counts[s] += 1
    mask0 = local == prefix_length
    rsidx = sample_idx[mask0]
    mask01 = mask0 | (local == prefix_length + 1)
    rts = np.asarray(timestamps, np.float32)[mask01].reshape(-1, 2)
    return local, counts, rsidx, rts


if __name__ == "__main__":
    key = jax.random.PRNGKey(0)
    k_ev, k_ts, k_ts2 = jax.random.split(key, 3)
    imsize = (16, 16)

    # --- test 1: 4 samples x 2 timestamps, interleaved, prefix=suffix=0 ----
    sample_idx = np.array([0, 0, 1, 2, 1, 2, 3, 3], dtype=np.int64)
    N = sample_idx.shape[0]
    events = jax.random.normal(k_ev, (N, 4), dtype=jnp.float32)   # unused
    timestamps = jax.random.uniform(k_ts, (N,), dtype=jnp.float32)

    (result, result_timestamps, result_sample_idx), local_idx = model_forward(
        events, timestamps, sample_idx, imsize,
        prefix_length=0, suffix_length=0)
    jax.block_until_ready((result, result_timestamps, result_sample_idx,
                           local_idx))

    ref_local, ref_sizes, ref_rsidx, ref_rts = _reference(
        sample_idx, np.asarray(timestamps), prefix_length=0)

    assert result[-1].shape == (int(sample_idx[-1]) + 1, 2, 16, 16)
    assert result[0].shape == (int(sample_idx[-1]) + 1, 2, 2, 2)
    np.testing.assert_array_equal(np.asarray(local_idx), ref_local)
    np.testing.assert_array_equal(np.asarray(result_sample_idx), ref_rsidx)
    np.testing.assert_allclose(np.asarray(result_timestamps), ref_rts,
                               rtol=0, atol=0)
    for r in result:
        assert float(jnp.abs(r).sum()) == 0.0

    # --- test 2: 3 samples x 4 timestamps, shuffled, prefix=suffix=1 -------
    sample_idx2 = np.array([0, 1, 0, 1, 2, 2, 0, 2, 1, 0, 2, 1], dtype=np.int64)
    N2 = sample_idx2.shape[0]
    events2 = jnp.zeros((N2, 4), jnp.float32)                     # unused
    timestamps2 = jax.random.uniform(k_ts2, (N2,), dtype=jnp.float32)

    (result2, rts2, rsidx2), local2 = model_forward(
        events2, timestamps2, sample_idx2, imsize,
        prefix_length=1, suffix_length=1)
    jax.block_until_ready((result2, rts2, rsidx2, local2))

    ref_local2, _, ref_rsidx2, ref_rts2 = _reference(
        sample_idx2, np.asarray(timestamps2), prefix_length=1)
    np.testing.assert_array_equal(np.asarray(local2), ref_local2)
    np.testing.assert_array_equal(np.asarray(rsidx2), ref_rsidx2)
    np.testing.assert_allclose(np.asarray(rts2), ref_rts2, rtol=0, atol=0)

    print("KERNEL_OK")
</pallas_src>

<mosaic_0001>
module attributes {stable_mosaic.version = 11 : i64} {
  func.func @_local_idx_kernel(%arg0: i32, %arg1: memref<1x8xi32, #tpu.memory_space<vmem>>, %arg2: memref<1x8xf32, #tpu.memory_space<vmem>>, %arg3: memref<1x8xi32, #tpu.memory_space<vmem>>, %arg4: memref<4x1xi32, #tpu.memory_space<vmem>>, %arg5: memref<4x1xi32, #tpu.memory_space<vmem>>, %arg6: memref<8x1xf32, #tpu.memory_space<vmem>>) attributes {dimension_semantics = [#tpu.dimension_semantics<arbitrary>], iteration_bounds = array<i64: 1>, scalar_prefetch = 0 : i64, scratch_operands = 0 : i64, tpu.core_type = #tpu.core_type<tc>, window_params = [{pipeline_mode = #tpu.pipeline_mode<synchronous>, transform_indices = @transform_0, window_bounds = array<i64: 1, 8>}, {pipeline_mode = #tpu.pipeline_mode<synchronous>, transform_indices = @transform_1, window_bounds = array<i64: 1, 8>}, {pipeline_mode = #tpu.pipeline_mode<synchronous>, transform_indices = @transform_2, window_bounds = array<i64: 1, 8>}, {pipeline_mode = #tpu.pipeline_mode<synchronous>, transform_indices = @transform_3, window_bounds = array<i64: 4, 1>}, {pipeline_mode = #tpu.pipeline_mode<synchronous>, transform_indices = @transform_4, window_bounds = array<i64: 4, 1>}, {pipeline_mode = #tpu.pipeline_mode<synchronous>, transform_indices = @transform_5, window_bounds = array<i64: 8, 1>}]} {
    %c0 = arith.constant 0 : index
    %c0_0 = arith.constant 0 : index
    %0 = vector.load %arg1[%c0, %c0_0] : memref<1x8xi32, #tpu.memory_space<vmem>>, vector<1x8xi32>
    %c0_1 = arith.constant 0 : index
    %c0_2 = arith.constant 0 : index
    %1 = vector.load %arg2[%c0_1, %c0_2] : memref<1x8xf32, #tpu.memory_space<vmem>>, vector<1x8xf32>
    %2 = tpu.iota {dimensions = array<i32: 0>} : vector<4x8xi32>
    %3 = vector.broadcast %0 : vector<1x8xi32> to vector<4x8xi32>
    %4 = arith.cmpi eq, %3, %2 : vector<4x8xi32>
    %5 = arith.extui %4 : vector<4x8xi1> to vector<4x8xi32>
    %6 = tpu.iota {dimensions = array<i32: 1>} : vector<4x8xi32>
    %c1_i32 = arith.constant 1 : i32
    %7 = tpu.dynamic_rotate %5 by %c1_i32 dim 1 : vector<4x8xi32>, i32 -> vector<4x8xi32>
    %c1_i32_3 = arith.constant 1 : i32
    %8 = vector.broadcast %c1_i32_3 : i32 to vector<4x8xi32>
    %9 = arith.cmpi sge, %6, %8 : vector<4x8xi32>
    %c0_i32 = arith.constant 0 : i32
    %10 = vector.broadcast %c0_i32 : i32 to vector<4x8xi32>
    %11 = arith.select %9, %7, %10 : vector<4x8xi1>, vector<4x8xi32>
    %12 = arith.addi %5, %11 : vector<4x8xi32>
    %c2_i32 = arith.constant 2 : i32
    %13 = tpu.dynamic_rotate %12 by %c2_i32 dim 1 : vector<4x8xi32>, i32 -> vector<4x8xi32>
    %c2_i32_4 = arith.constant 2 : i32
    %14 = vector.broadcast %c2_i32_4 : i32 to vector<4x8xi32>
    %15 = arith.cmpi sge, %6, %14 : vector<4x8xi32>
    %c0_i32_5 = arith.constant 0 : i32
    %16 = vector.broadcast %c0_i32_5 : i32 to vector<4x8xi32>
    %17 = arith.select %15, %13, %16 : vector<4x8xi1>, vector<4x8xi32>
    %18 = arith.addi %12, %17 : vector<4x8xi32>
    %c4_i32 = arith.constant 4 : i32
    %19 = tpu.dynamic_rotate %18 by %c4_i32 dim 1 : vector<4x8xi32>, i32 -> vector<4x8xi32>
    %c4_i32_6 = arith.constant 4 : i32
    %20 = vector.broadcast %c4_i32_6 : i32 to vector<4x8xi32>
    %21 = arith.cmpi sge, %6, %20 : vector<4x8xi32>
    %c0_i32_7 = arith.constant 0 : i32
    %22 = vector.broadcast %c0_i32_7 : i32 to vector<4x8xi32>
    %23 = arith.select %21, %19, %22 : vector<4x8xi1>, vector<4x8xi32>
    %24 = arith.addi %18, %23 : vector<4x8xi32>
    %25 = arith.muli %5, %24 : vector<4x8xi32>
    %cst = arith.constant dense<0> : vector<8xi32>
    %26 = vector.multi_reduction <add>, %25, %cst [0] : vector<4x8xi32> to vector<8xi32>
    %27 = vector.shape_cast %26 : vector<8xi32> to vector<1x8xi32>
    %c1_i32_8 = arith.constant 1 : i32
    %28 = vector.broadcast %c1_i32_8 : i32 to vector<1x8xi32>
    %29 = arith.subi %27, %28 : vector<1x8xi32>
    %c0_9 = arith.constant 0 : index
    %c0_10 = arith.constant 0 : index
    %30 = vector.load %arg3[%c0_9, %c0_10] : memref<1x8xi32, #tpu.memory_space<vmem>>, vector<1x8xi32>
    tpu.vector_store %arg3[%c0_9, %c0_10], %29 {strides = array<i32>} : memref<1x8xi32, #tpu.memory_space<vmem>>, vector<1x8xi32>,
    %cst_11 = arith.constant dense<0> : vector<4xi32>
    %31 = vector.multi_reduction <add>, %5, %cst_11 [1] : vector<4x8xi32> to vector<4xi32>
    %32 = vector.shape_cast %31 : vector<4xi32> to vector<4x1xi32>
    %c0_12 = arith.constant 0 : index
    %c0_13 = arith.constant 0 : index
    %33 = vector.load %arg4[%c0_12, %c0_13] : memref<4x1xi32, #tpu.memory_space<vmem>>, vector<4x1xi32>
    tpu.vector_store %arg4[%c0_12, %c0_13], %32 {strides = array<i32>} : memref<4x1xi32, #tpu.memory_space<vmem>>, vector<4x1xi32>,
    %c0_i32_14 = arith.constant 0 : i32
    %34 = vector.broadcast %c0_i32_14 : i32 to vector<1x8xi32>
    %35 = arith.cmpi eq, %29, %34 : vector<1x8xi32>
    %c1_i32_15 = arith.constant 1 : i32
    %36 = vector.broadcast %c1_i32_15 : i32 to vector<1x8xi32>
    %37 = arith.cmpi eq, %29, %36 : vector<1x8xi32>
    %38 = arith.ori %35, %37 : vector<1x8xi1>
    %39 = arith.extui %35 : vector<1x8xi1> to vector<1x8xi32>
    %40 = tpu.iota {dimensions = array<i32: 1>} : vector<1x8xi32>
    %c1_i32_16 = arith.constant 1 : i32
    %41 = tpu.dynamic_rotate %39 by %c1_i32_16 dim 1 : vector<1x8xi32>, i32 -> vector<1x8xi32>
    %c1_i32_17 = arith.constant 1 : i32
    %42 = vector.broadcast %c1_i32_17 : i32 to vector<1x8xi32>
    %43 = arith.cmpi sge, %40, %42 : vector<1x8xi32>
    %c0_i32_18 = arith.constant 0 : i32
    %44 = vector.broadcast %c0_i32_18 : i32 to vector<1x8xi32>
    %45 = arith.select %43, %41, %44 : vector<1x8xi1>, vector<1x8xi32>
    %46 = arith.addi %39, %45 : vector<1x8xi32>
    %c2_i32_19 = arith.constant 2 : i32
    %47 = tpu.dynamic_rotate %46 by %c2_i32_19 dim 1 : vector<1x8xi32>, i32 -> vector<1x8xi32>
    %c2_i32_20 = arith.constant 2 : i32
    %48 = vector.broadcast %c2_i32_20 : i32 to vector<1x8xi32>
    %49 = arith.cmpi sge, %40, %48 : vector<1x8xi32>
    %c0_i32_21 = arith.constant 0 : i32
    %50 = vector.broadcast %c0_i32_21 : i32 to vector<1x8xi32>
    %51 = arith.select %49, %47, %50 : vector<1x8xi1>, vector<1x8xi32>
    %52 = arith.addi %46, %51 : vector<1x8xi32>
    %c4_i32_22 = arith.constant 4 : i32
    %53 = tpu.dynamic_rotate %52 by %c4_i32_22 dim 1 : vector<1x8xi32>, i32 -> vector<1x8xi32>
    %c4_i32_23 = arith.constant 4 : i32
    %54 = vector.broadcast %c4_i32_23 : i32 to vector<1x8xi32>
    %55 = arith.cmpi sge, %40, %54 : vector<1x8xi32>
    %c0_i32_24 = arith.constant 0 : i32
    %56 = vector.broadcast %c0_i32_24 : i32 to vector<1x8xi32>
    %57 = arith.select %55, %53, %56 : vector<1x8xi1>, vector<1x8xi32>
    %58 = arith.addi %52, %57 : vector<1x8xi32>
    %c1_i32_25 = arith.constant 1 : i32
    %59 = vector.broadcast %c1_i32_25 : i32 to vector<1x8xi32>
    %60 = arith.subi %58, %59 : vector<1x8xi32>
    %61 = arith.extui %38 : vector<1x8xi1> to vector<1x8xi32>
    %62 = tpu.iota {dimensions = array<i32: 1>} : vector<1x8xi32>
    %c1_i32_26 = arith.constant 1 : i32
    %63 = tpu.dynamic_rotate %61 by %c1_i32_26 dim 1 : vector<1x8xi32>, i32 -> vector<1x8xi32>
    %c1_i32_27 = arith.constant 1 : i32
    %64 = vector.broadcast %c1_i32_27 : i32 to vector<1x8xi32>
    %65 = arith.cmpi sge, %62, %64 : vector<1x8xi32>
    %c0_i32_28 = arith.constant 0 : i32
    %66 = vector.broadcast %c0_i32_28 : i32 to vector<1x8xi32>
    %67 = arith.select %65, %63, %66 : vector<1x8xi1>, vector<1x8xi32>
    %68 = arith.addi %61, %67 : vector<1x8xi32>
    %c2_i32_29 = arith.constant 2 : i32
    %69 = tpu.dynamic_rotate %68 by %c2_i32_29 dim 1 : vector<1x8xi32>, i32 -> vector<1x8xi32>
    %c2_i32_30 = arith.constant 2 : i32
    %70 = vector.broadcast %c2_i32_30 : i32 to vector<1x8xi32>
    %71 = arith.cmpi sge, %62, %70 : vector<1x8xi32>
    %c0_i32_31 = arith.constant 0 : i32
    %72 = vector.broadcast %c0_i32_31 : i32 to vector<1x8xi32>
    %73 = arith.select %71, %69, %72 : vector<1x8xi1>, vector<1x8xi32>
    %74 = arith.addi %68, %73 : vector<1x8xi32>
    %c4_i32_32 = arith.constant 4 : i32
    %75 = tpu.dynamic_rotate %74 by %c4_i32_32 dim 1 : vector<1x8xi32>, i32 -> vector<1x8xi32>
    %c4_i32_33 = arith.constant 4 : i32
    %76 = vector.broadcast %c4_i32_33 : i32 to vector<1x8xi32>
    %77 = arith.cmpi sge, %62, %76 : vector<1x8xi32>
    %c0_i32_34 = arith.constant 0 : i32
    %78 = vector.broadcast %c0_i32_34 : i32 to vector<1x8xi32>
    %79 = arith.select %77, %75, %78 : vector<1x8xi1>, vector<1x8xi32>
    %80 = arith.addi %74, %79 : vector<1x8xi32>
    %c1_i32_35 = arith.constant 1 : i32
    %81 = vector.broadcast %c1_i32_35 : i32 to vector<1x8xi32>
    %82 = arith.subi %80, %81 : vector<1x8xi32>
    %83 = vector.broadcast %60 : vector<1x8xi32> to vector<4x8xi32>
    %84 = arith.cmpi eq, %83, %2 : vector<4x8xi32>
    %85 = vector.broadcast %35 : vector<1x8xi1> to vector<4x8xi1>
    %86 = arith.andi %85, %84 : vector<4x8xi1>
    %c0_i32_36 = arith.constant 0 : i32
    %87 = vector.shape_cast %0 : vector<1x8xi32> to vector<1x8xi32>
    %88 = vector.broadcast %87 : vector<1x8xi32> to vector<4x8xi32>
    %89 = vector.broadcast %c0_i32_36 : i32 to vector<4x8xi32>
    %90 = arith.select %86, %88, %89 : vector<4x8xi1>, vector<4x8xi32>
    %cst_37 = arith.constant dense<0> : vector<4xi32>
    %91 = vector.multi_reduction <add>, %90, %cst_37 [1] : vector<4x8xi32> to vector<4xi32>
    %92 = vector.shape_cast %91 : vector<4xi32> to vector<4x1xi32>
    %c0_38 = arith.constant 0 : index
    %c0_39 = arith.constant 0 : index
    %93 = vector.load %arg5[%c0_38, %c0_39] : memref<4x1xi32, #tpu.memory_space<vmem>>, vector<4x1xi32>
    tpu.vector_store %arg5[%c0_38, %c0_39], %92 {strides = array<i32>} : memref<4x1xi32, #tpu.memory_space<vmem>>, vector<4x1xi32>,
    %94 = tpu.iota {dimensions = array<i32: 0>} : vector<8x8xi32>
    %95 = vector.broadcast %82 : vector<1x8xi32> to vector<8x8xi32>
    %96 = arith.cmpi eq, %95, %94 : vector<8x8xi32>
    %97 = vector.broadcast %38 : vector<1x8xi1> to vector<8x8xi1>
    %98 = arith.andi %97, %96 : vector<8x8xi1>
    %cst_40 = arith.constant 0.000000e+00 : f32
    %99 = vector.shape_cast %1 : vector<1x8xf32> to vector<1x8xf32>
    %100 = vector.broadcast %99 : vector<1x8xf32> to vector<8x8xf32>
    %101 = vector.broadcast %cst_40 : f32 to vector<8x8xf32>
    %102 = arith.select %98, %100, %101 : vector<8x8xi1>, vector<8x8xf32>
    %cst_41 = arith.constant dense<0.000000e+00> : vector<8xf32>
    %103 = vector.multi_reduction <add>, %102, %cst_41 [1] : vector<8x8xf32> to vector<8xf32>
    %104 = vector.shape_cast %103 : vector<8xf32> to vector<8x1xf32>
    %c0_42 = arith.constant 0 : index
    %c0_43 = arith.constant 0 : index
    %105 = vector.load %arg6[%c0_42, %c0_43] : memref<8x1xf32, #tpu.memory_space<vmem>>, vector<8x1xf32>
    tpu.vector_store %arg6[%c0_42, %c0_43], %104 {strides = array<i32>} : memref<8x1xf32, #tpu.memory_space<vmem>>, vector<8x1xf32>,
    return
  }
  func.func @transform_0(%arg0: i32) -> (i32, i32) {
    %c0_i32 = arith.constant 0 : i32
    %c0_i32_0 = arith.constant 0 : i32
    %c0_i32_1 = arith.constant 0 : i32
    return %c0_i32, %c0_i32_0 : i32, i32
  }
  func.func @transform_1(%arg0: i32) -> (i32, i32) {
    %c0_i32 = arith.constant 0 : i32
    %c0_i32_0 = arith.constant 0 : i32
    %c0_i32_1 = arith.constant 0 : i32
    return %c0_i32, %c0_i32_0 : i32, i32
  }
  func.func @transform_2(%arg0: i32) -> (i32, i32) {
    %c0_i32 = arith.constant 0 : i32
    %c0_i32_0 = arith.constant 0 : i32
    %c0_i32_1 = arith.constant 0 : i32
    return %c0_i32, %c0_i32_0 : i32, i32
  }
  func.func @transform_3(%arg0: i32) -> (i32, i32) {
    %c0_i32 = arith.constant 0 : i32
    %c0_i32_0 = arith.constant 0 : i32
    %c0_i32_1 = arith.constant 0 : i32
    return %c0_i32, %c0_i32_0 : i32, i32
  }
  func.func @transform_4(%arg0: i32) -> (i32, i32) {
    %c0_i32 = arith.constant 0 : i32
    %c0_i32_0 = arith.constant 0 : i32
    %c0_i32_1 = arith.constant 0 : i32
    return %c0_i32, %c0_i32_0 : i32, i32
  }
  func.func @transform_5(%arg0: i32) -> (i32, i32) {
    %c0_i32 = arith.constant 0 : i32
    %c0_i32_0 = arith.constant 0 : i32
    %c0_i32_1 = arith.constant 0 : i32
    return %c0_i32, %c0_i32_0 : i32, i32
  }
}

</mosaic_0001>

<llo_original>
// kernel: tpu_custom_call.1
$region0: #{tpu_custom_call.1}
  #allocation0 [shape = 'u32[]', space=smem, size = 0x4, offset = 0x4, fixed_abs, tag = 'smem constant byte address 0x4 - core index']
  #allocation1 [shape = 'u32[144,128]{1,0:T(1,128)}', space=vmem, size = 0x12000, scoped, tag = 'internal scratch']
  %s0 = inlined_call_operand.hbm [shape: s32[1,8], index: 0, kind: input, shape index: {}]
  %s1 = inlined_call_operand.vmem [shape: f32[1,8], index: 1, kind: input, shape index: {}]
  %s2 = inlined_call_operand.hbm [shape: s32[1,8], index: 2, kind: output, shape index: {0}]
  %s3 = inlined_call_operand.vmem [shape: s32[4,1], index: 3, kind: output, shape index: {1}]
  %s4 = inlined_call_operand.vmem [shape: s32[4,1], index: 4, kind: output, shape index: {2}]
  %s5 = inlined_call_operand.vmem [shape: f32[8,1], index: 5, kind: output, shape index: {3}]
  %6 = xla_tuple %s2, %s3, %s4, %s5
  %s7 = sld [smem:[#allocation0]]
  $region46: #{tpu_custom_call.1} parent=0
    _
  %s9 = ssub.s32 1, %s7
  %s10 = scalar_select 0, %s9, %s7
  $region1: #{tpu_custom_call.1} parent=0
    #allocation2 [shape = 'u8[512]{0}', space=vmem, size = 0x400, scoped, tag = 'input window, operand 0, single buffered']
    #allocation3 [shape = 's32[1]{0}', space=sflag, size = 0x4, scoped, tag = 'scoped memory for tpu_custom_call.1']
    #allocation4 [shape = 's32[1]{0}', space=sflag, size = 0x4, scoped, tag = 'scoped memory for tpu_custom_call.1']
    #allocation5 [shape = 'u8[512]{0}', space=vmem, size = 0x400, scoped, tag = 'output window, operand 0, single buffered']
    %11 = vsyncpa [#allocation3], 0
    %12 = vsyncpa [#allocation4], 0
    // Predicated region
    $region2: #{tpu_custom_call.1} parent=1 // pred_check
      _
    $region3: #{tpu_custom_call.1} parent=1 // pred_check_branch
      %14 = sbr.rel (0) target = $region5
    $region4: #{tpu_custom_call.1} parent=1 // pred_region
      %s16 = ssub.s32 16, 16
      %17 = vsyncadd [#allocation3], %s16
      %s19 = sshll.u32 [#allocation2], 4
      %s20 = int_to_ptr.vmem [resolvable:$true] %s19
      %22 = dma.hbm_to_vmem [thread:$0]  %s0, 16, %s20, [#allocation3]
    $region5: #{tpu_custom_call.1} parent=1 // pred_fallthru
      _
    // Predicated region
    $region6: #{tpu_custom_call.1} parent=1 // pred_check
      _
    $region7: #{tpu_custom_call.1} parent=1 // pred_check_branch
      %24 = sbr.rel (0) target = $region9
    $region8: #{tpu_custom_call.1} parent=1 // pred_region
      _
    $region9: #{tpu_custom_call.1} parent=1 // pred_fallthru
      _
    // Predicated region
    $region10: #{tpu_custom_call.1} parent=1 // pred_check
      _
    $region11: #{tpu_custom_call.1} parent=1 // pred_check_branch
      %26 = sbr.rel (0) target = $region13
    $region12: #{tpu_custom_call.1} parent=1 // pred_region
      %27 = dma.done [#allocation3], 16
    $region13: #{tpu_custom_call.1} parent=1 // pred_fallthru
      _
    %v28 = vld [vmem:[#allocation2] sm:$0x1]
    %v29 = vld [vmem:[%s1] sm:$0x1]
    %v30 = vlaneseq
    %v31 = vshrl.u32 %v30, 7
    %v32 = vlaneseq
    %v33 = vshrl.u32 %v32, 7
    %v34 = vsub.s32 0, %v33
    %v35 = vrot.slane %v28, %v34
    %vm36 = vcmp.eq.s32.totalorder %v35, %v31
    %v37 = vsel %vm36, 1, 0
    %v38 = vlaneseq
    %v39 = vand.u32 %v38, 127
    %vm40 = vcmask 1047616
    %41 = vrot.lane.b32.xlu0 %v37, 8
    %v42 = vpop.permute.xlu0 %41
    %v43 = vsel %vm40, %v42, %v37
    %44 = vrot.lane.b32.xlu0 %v43, 8
    %v45 = vpop.permute.xlu0 %44
    %v46 = vsel %vm40, %v45, %v37
    %vm47 = vcmp.ge.s32.totalorder %v39, 1
    %48 = vrot.lane.b32.xlu0 %v46, 121
    %v49 = vpop.permute.xlu0 %48
    %v50 = vsel %vm47, %v49, 0
    %v51 = vadd.s32 %v37, %v50
    %52 = vrot.lane.b32.xlu0 %v51, 8
    %v53 = vpop.permute.xlu0 %52
    %v54 = vsel %vm40, %v53, %v51
    %55 = vrot.lane.b32.xlu0 %v54, 8
    %v56 = vpop.permute.xlu0 %55
    %v57 = vsel %vm40, %v56, %v51
    %vm58 = vcmp.ge.s32.totalorder %v39, 2
    %59 = vrot.lane.b32.xlu0 %v57, 122
    %v60 = vpop.permute.xlu0 %59
    %v61 = vsel %vm58, %v60, 0
    %v62 = vadd.s32 %v51, %v61
    %63 = vrot.lane.b32.xlu0 %v62, 8
    %v64 = vpop.permute.xlu0 %63
    %v65 = vsel %vm40, %v64, %v62
    %66 = vrot.lane.b32.xlu0 %v65, 8
    %v67 = vpop.permute.xlu0 %66
    %v68 = vsel %vm40, %v67, %v62
    %vm69 = vcmp.ge.s32.totalorder %v39, 4
    %70 = vrot.lane.b32.xlu0 %v68, 124
    %v71 = vpop.permute.xlu0 %70
    %v72 = vsel %vm69, %v71, 0
    %v73 = vadd.s32 %v62, %v72
    %v74 = vmul.u32 %v37, %v73
    %vm75 = vcmask 60416
    %v76 = vsel %vm75, %v74, 0
    %v77 = vrot.slane %v76, 4
    %v78 = vadd.s32 %v76, %v77
    %v79 = vrot.slane %v78, 2
    %v80 = vadd.s32 %v78, %v79
    %v81 = vrot.slane %v80, 1
    %v82 = vadd.s32 %v80, %v81
    %v83 = vsub.s32 %v82, 1
    %vm84 = vcmask 57344
    %85 = vst.msk [vmem:[#allocation5] sm:$0x1] %vm84, %v83
    %v86 = vsel %vm75, %v37, 0
    %v87 = vand.u32 %v86, 65535
    %v88 = vshrl.u32 %v86, 16
    %v89 = vcvt.s32.f32 %v87
    %v90 = vcvt.s32.f32 %v88
    %91 = vadd.xlane.f32.xlu0 %v89
    %v92 = vpop.xlane.xlu0 %91
    %93 = vadd.xlane.f32.xlu0 %v90
    %v94 = vpop.xlane.xlu0 %93
    %v95 = vcvt.f32.s32 %v92
    %v96 = vcvt.f32.s32 %v94
    %v97 = vshll.u32 %v96, 16
    %v98 = vadd.s32 %v97, %v95
    %vm99 = vcmask 3072
    %100 = vst.msk [vmem:[%s3] sm:$0xf] %vm99, %v98
    %vm101 = vcmp.eq.s32.totalorder %v83, 0
    %vm102 = vcmp.eq.s32.totalorder %v83, 1
    %vm103 = vmor %vm101, %vm102
    %v104 = vsel %vm101, 1, 0
    %105 = vrot.lane.b32.xlu0 %v104, 8
    %v106 = vpop.permute.xlu0 %105
    %v107 = vsel %vm40, %v106, %v104
    %108 = vrot.lane.b32.xlu0 %v107, 8
    %v109 = vpop.permute.xlu0 %108
    %v110 = vsel %vm40, %v109, %v104
    %111 = vrot.lane.b32.xlu0 %v110, 121
    %v112 = vpop.permute.xlu0 %111
    %v113 = vsel %vm47, %v112, 0
    %v114 = vadd.s32 %v104, %v113
    %115 = vrot.lane.b32.xlu0 %v114, 8
    %v116 = vpop.permute.xlu0 %115
    %v117 = vsel %vm40, %v116, %v114
    %118 = vrot.lane.b32.xlu0 %v117, 8
    %v119 = vpop.permute.xlu0 %118
    %v120 = vsel %vm40, %v119, %v114
    %121 = vrot.lane.b32.xlu0 %v120, 122
    %v122 = vpop.permute.xlu0 %121
    %v123 = vsel %vm58, %v122, 0
    %v124 = vadd.s32 %v114, %v123
    %125 = vrot.lane.b32.xlu0 %v124, 8
    %v126 = vpop.permute.xlu0 %125
    %v127 = vsel %vm40, %v126, %v124
    %128 = vrot.lane.b32.xlu0 %v127, 8
    %v129 = vpop.permute.xlu0 %128
    %v130 = vsel %vm40, %v129, %v124
    %131 = vrot.lane.b32.xlu0 %v130, 124
    %v132 = vpop.permute.xlu0 %131
    %v133 = vsel %vm69, %v132, 0
    %v134 = vadd.s32 %v124, %v133
    %v135 = vsub.s32 %v134, 1
    %v136 = vsel %vm103, 1, 0
    %137 = vrot.lane.b32.xlu0 %v136, 8
    %v138 = vpop.permute.xlu0 %137
    %v139 = vsel %vm40, %v138, %v136
    %140 = vrot.lane.b32.xlu0 %v139, 8
    %v141 = vpop.permute.xlu0 %140
    %v142 = vsel %vm40, %v141, %v136
    %143 = vrot.lane.b32.xlu0 %v142, 121
    %v144 = vpop.permute.xlu0 %143
    %v145 = vsel %vm47, %v144, 0
    %v146 = vadd.s32 %v136, %v145
    %147 = vrot.lane.b32.xlu0 %v146, 8
    %v148 = vpop.permute.xlu0 %147
    %v149 = vsel %vm40, %v148, %v146
    %150 = vrot.lane.b32.xlu0 %v149, 8
    %v151 = vpop.permute.xlu0 %150
    %v152 = vsel %vm40, %v151, %v146
    %153 = vrot.lane.b32.xlu0 %v152, 122
    %v154 = vpop.permute.xlu0 %153
    %v155 = vsel %vm58, %v154, 0
    %v156 = vadd.s32 %v146, %v155
    %157 = vrot.lane.b32.xlu0 %v156, 8
    %v158 = vpop.permute.xlu0 %157
    %v159 = vsel %vm40, %v158, %v156
    %160 = vrot.lane.b32.xlu0 %v159, 8
    %v161 = vpop.permute.xlu0 %160
    %v162 = vsel %vm40, %v161, %v156
    %163 = vrot.lane.b32.xlu0 %v162, 124
    %v164 = vpop.permute.xlu0 %163
    %v165 = vsel %vm69, %v164, 0
    %v166 = vadd.s32 %v156, %v165
    %v167 = vsub.s32 %v166, 1
    %v168 = vlaneseq
    %v169 = vshrl.u32 %v168, 7
    %v170 = vsub.s32 0, %v169
    %v171 = vrot.slane %v135, %v170
    %vm172 = vcmp.eq.s32.totalorder %v171, %v31
    %vm173 = vcmp.eq.s32.totalorder %v104, 1
    %vm174 = vmand %vm173, %vm172
    %v175 = vsel %vm174, %v35, 0
    %v176 = vsel %vm75, %v175, 0
    %v177 = vand.u32 %v176, 65535
    %v178 = vshrl.u32 %v176, 16
    %v179 = vcvt.s32.f32 %v177
    %v180 = vcvt.s32.f32 %v178
    %181 = vadd.xlane.f32.xlu0 %v179
    %v182 = vpop.xlane.xlu0 %181
    %183 = vadd.xlane.f32.xlu0 %v180
    %v184 = vpop.xlane.xlu0 %183
    %v185 = vcvt.f32.s32 %v182
    %v186 = vcvt.f32.s32 %v184
    %v187 = vshll.u32 %v186, 16
    %v188 = vadd.s32 %v187, %v185
    %189 = vst.msk [vmem:[%s4] sm:$0xf] %vm99, %v188
    %v190 = vlaneseq
    %v191 = vshrl.u32 %v190, 7
    %v192 = vsub.s32 0, %v191
    %v193 = vrot.slane %v167, %v192
    %vm194 = vcmp.eq.s32.totalorder %v193, %v31
    %vm195 = vcmp.eq.s32.totalorder %v136, 1
    %vm196 = vmand %vm195, %vm194
    %v198 = vlaneseq
    %v199 = vshrl.u32 %v198, 7
    %v200 = vsub.s32 0, %v199
    %v201 = vrot.slane %v29, %v200
    %v203 = vsel %vm196, %v201, 0.0
    %vm204 = vcmask 64512
    %v205 = vsel %vm204, %v203, 0.0
    %206 = vadd.xlane.f32.xlu0 %v205
    %v207 = vpop.xlane.xlu0 %206
    %vm208 = vcmask 7168
    %209 = vst.msk [vmem:[%s5] sm:$0xff] %vm208, %v207
    // Predicated region
    $region14: #{tpu_custom_call.1} parent=1 // pred_check
      _
    $region15: #{tpu_custom_call.1} parent=1 // pred_check_branch
      %211 = sbr.rel (0) target = $region17
    $region16: #{tpu_custom_call.1} parent=1 // pred_region
      %s213 = ssub.s32 16, 16
      %214 = vsyncadd [#allocation4], %s213
      %s216 = sshll.u32 [#allocation5], 4
      %s217 = int_to_ptr.vmem [resolvable:$true] %s216
      %219 = dma.vmem_to_hbm [thread:$0]  %s217, 16, %s2, [#allocation4]
    $region17: #{tpu_custom_call.1} parent=1 // pred_fallthru
      _
    // Predicated region
    $region18: #{tpu_custom_call.1} parent=1 // pred_check
      _
    $region19: #{tpu_custom_call.1} parent=1 // pred_check_branch
      %221 = sbr.rel (0) target = $region21
    $region20: #{tpu_custom_call.1} parent=1 // pred_region
      _
    $region21: #{tpu_custom_call.1} parent=1 // pred_fallthru
      _
    // Predicated region
    $region22: #{tpu_custom_call.1} parent=1 // pred_check
      _
    $region23: #{tpu_custom_call.1} parent=1 // pred_check_branch
      %223 = sbr.rel (0) target = $region25
    $region24: #{tpu_custom_call.1} parent=1 // pred_region
      _
    $region25: #{tpu_custom_call.1} parent=1 // pred_fallthru
      _
    // Predicated region
    $region26: #{tpu_custom_call.1} parent=1 // pred_check
      _
    $region27: #{tpu_custom_call.1} parent=1 // pred_check_branch
      %225 = sbr.rel (0) target = $region29
    $region28: #{tpu_custom_call.1} parent=1 // pred_region
      _
    $region29: #{tpu_custom_call.1} parent=1 // pred_fallthru
      _
    // Predicated region
    $region30: #{tpu_custom_call.1} parent=1 // pred_check
      _
    $region31: #{tpu_custom_call.1} parent=1 // pred_check_branch
      %227 = sbr.rel (0) target = $region33
    $region32: #{tpu_custom_call.1} parent=1 // pred_region
      %228 = dma.done [#allocation4], 16
    $region33: #{tpu_custom_call.1} parent=1 // pred_fallthru
      _
    // Predicated region
    $region34: #{tpu_custom_call.1} parent=1 // pred_check
      _
    $region35: #{tpu_custom_call.1} parent=1 // pred_check_branch
      %230 = sbr.rel (0) target = $region37
    $region36: #{tpu_custom_call.1} parent=1 // pred_region
      _
    $region37: #{tpu_custom_call.1} parent=1 // pred_fallthru
      _
    // Predicated region
    $region38: #{tpu_custom_call.1} parent=1 // pred_check
      _
    $region39: #{tpu_custom_call.1} parent=1 // pred_check_branch
      %232 = sbr.rel (0) target = $region41
    $region40: #{tpu_custom_call.1} parent=1 // pred_region
      _
    $region41: #{tpu_custom_call.1} parent=1 // pred_fallthru
      _
    // Predicated region
    $region42: #{tpu_custom_call.1} parent=1 // pred_check
      _
    $region43: #{tpu_custom_call.1} parent=1 // pred_check_branch
      %234 = sbr.rel (0) target = $region45
    $region44: #{tpu_custom_call.1} parent=1 // pred_region
      _
    $region45: #{tpu_custom_call.1} parent=1 // pred_fallthru
      _
    %235 = vsyncpa [#allocation3], 1
    %236 = vsyncpa [#allocation4], 1

</llo_original>
